<compile_context>
chip_gen: v5e
topology: v5e:2x2
jax: 0.10.0
libtpu: 0.0.40
codegen_flags: <defaults>
</compile_context>

<pallas_src>
import numpy as np
import jax
import jax.numpy as jnp
from jax.experimental import pallas as pl
from jax.experimental.pallas import tpu as pltpu

_LANE = 128
_LANES_BUDGET = 128 * 1024   # lanes per channel per block: 3*T*4B ~= 1.5 MiB/block (f32)
_MIN_TILE = 32 * _LANE       # smallest tile worth using when avoiding a padding copy


def _round_up(x, m):
    return (x + m - 1) // m * m


def _diag_kernel(scale_ref, bias_ref, x_ref, o_ref):
    """Diagonal 1x1 conv: y[:, c, :] = scale[c] * x[:, c, :] + bias[c] (SMEM scalars)."""
    for c in range(3):
        xc = x_ref[:, c, :]                                   # (Bn, T)
        o_ref[:, c, :] = (scale_ref[c] * xc + bias_ref[c]).astype(o_ref.dtype)


def _mix_kernel(w_ref, bias_ref, x_ref, o_ref):
    """General 3x3 channel mix as unrolled VPU FMAs driven by SMEM scalars (no MXU)."""
    x0 = x_ref[:, 0, :]
    x1 = x_ref[:, 1, :]
    x2 = x_ref[:, 2, :]
    for c in range(3):
        y = w_ref[c, 0] * x0 + w_ref[c, 1] * x1 + w_ref[c, 2] * x2 + bias_ref[c]
        o_ref[:, c, :] = y.astype(o_ref.dtype)


def _pick_spatial_tile(hw):
    """Returns (T, hw_padded): lane-tile size (multiple of 128) and padded spatial extent."""
    hw_lane = _round_up(hw, _LANE)
    if hw_lane <= _LANES_BUDGET:
        return hw_lane, hw_lane                               # one tile per image plane
    if hw % _LANE == 0:
        # Largest multiple-of-128 divisor of hw within budget -> no padding copy needed.
        n_blocks = hw // _LANE
        for d in range(_LANES_BUDGET // _LANE, 0, -1):
            if n_blocks % d == 0 and d * _LANE >= _MIN_TILE:
                return d * _LANE, hw
    t = _LANES_BUDGET
    return t, _round_up(hw, t)


def _pick_batch_block(n, t):
    """Merge batch elements per grid step for small images (amortize ~0.35us/step)."""
    bn = max(1, min(n, _LANES_BUDGET // t))
    while n % bn:
        bn -= 1
    return bn


def mean_shift(x_nchw, weight, bias):
    """MeanShift forward. x_nchw: (N, 3, H, W); weight: (3,3) or (3,3,1,1); bias: (3,)."""
    N, C, H, W = x_nchw.shape
    assert C == 3, "MeanShift is a 3->3 channel 1x1 conv"
    HW = H * W

    w = jnp.asarray(weight, dtype=jnp.float32).reshape(3, 3)
    b = jnp.asarray(bias, dtype=jnp.float32).reshape(3)

    T, HW_pad = _pick_spatial_tile(HW)
    Bn = _pick_batch_block(N, T)

    x2 = x_nchw.reshape(N, C, HW)
    if HW_pad != HW:
        x2 = jnp.pad(x2, ((0, 0), (0, 0), (0, HW_pad - HW)))

    # Diagonal fast path (the actual MeanShift weight is eye(3)). Only decidable when the
    # weight is concrete (outside jit); otherwise fall back to the general 3x3 mix.
    try:
        w_host = np.asarray(jax.device_get(w))
        is_diag = bool(np.all(w_host[~np.eye(3, dtype=bool)] == 0.0))
    except Exception:
        is_diag = False

    smem_spec = pl.BlockSpec(memory_space=pltpu.MemorySpace.SMEM)
    if is_diag:
        kernel = _diag_kernel
        scalar_args = (jnp.diagonal(w), b)                    # (3,), (3,)
    else:
        kernel = _mix_kernel
        scalar_args = (w, b)                                  # (3,3), (3,)

    grid = (N // Bn, HW_pad // T)
    x_spec = pl.BlockSpec((Bn, C, T), lambda n, j: (n, 0, j))
    o_spec = pl.BlockSpec((Bn, C, T), lambda n, j: (n, 0, j))

    out = pl.pallas_call(
        kernel,
        out_shape=jax.ShapeDtypeStruct((N, C, HW_pad), x_nchw.dtype),
        grid_spec=pltpu.PrefetchScalarGridSpec(
            num_scalar_prefetch=0,
            grid=grid,
            in_specs=[smem_spec, smem_spec, x_spec],
            out_specs=o_spec,
        ),
        compiler_params=pltpu.CompilerParams(
            dimension_semantics=("parallel", "parallel"),
        ),
    )(*scalar_args, x2)

    if HW_pad != HW:
        out = out[:, :, :HW]
    return out.reshape(N, C, H, W)


if __name__ == "__main__":
    # Parameters exactly as MeanShift.__init__ builds them: weight = eye(3), bias = sign*mean_rgb.
    mean_rgb = (0.4488, 0.4371, 0.4040)
    sub = True
    sign = -1.0 if sub else 1.0
    weight = jnp.eye(3, dtype=jnp.float32)                    # (3,3,1,1) conv kernel, squeezed
    bias = jnp.array([sign * m for m in mean_rgb], dtype=jnp.float32)

    key = jax.random.PRNGKey(0)
    x = jax.random.uniform(key, (2, 3, 16, 16), dtype=jnp.float32)

    y = jax.block_until_ready(mean_shift(x, weight, bias))

    ref = jnp.einsum("oi,nihw->nohw", weight, x) + bias[None, :, None, None]
    assert y.shape == x.shape and y.dtype == x.dtype
    assert jnp.allclose(y, ref, atol=1e-5, rtol=1e-5), float(jnp.max(jnp.abs(y - ref)))

    # Also exercise the general (non-diagonal) fallback path once.
    w_mix = jnp.array([[0.5, 0.25, 0.25],
                       [0.1, 0.80, 0.10],
                       [0.2, 0.30, 0.50]], dtype=jnp.float32)
    y2 = jax.block_until_ready(mean_shift(x, w_mix, bias))
    ref2 = jnp.einsum("oi,nihw->nohw", w_mix, x) + bias[None, :, None, None]
    assert jnp.allclose(y2, ref2, atol=1e-5, rtol=1e-5), float(jnp.max(jnp.abs(y2 - ref2)))

    print("KERNEL_OK")
</pallas_src>

<mosaic_0001>
module attributes {stable_mosaic.version = 11 : i64} {
  func.func @_diag_kernel(%arg0: i32, %arg1: i32, %arg2: memref<3xf32, #tpu.memory_space<smem>>, %arg3: memref<3xf32, #tpu.memory_space<smem>>, %arg4: memref<2x3x256xf32, #tpu.memory_space<vmem>>, %arg5: memref<2x3x256xf32, #tpu.memory_space<vmem>>) attributes {dimension_semantics = [#tpu.dimension_semantics<parallel>, #tpu.dimension_semantics<parallel>], iteration_bounds = array<i64: 1, 1>, scalar_prefetch = 0 : i64, scratch_operands = 0 : i64, tpu.core_type = #tpu.core_type<tc>, window_params = [{transform_indices = @transform_0, window_bounds = array<i64: 3>}, {transform_indices = @transform_1, window_bounds = array<i64: 3>}, {transform_indices = @transform_2, window_bounds = array<i64: 2, 3, 256>}, {transform_indices = @transform_3, window_bounds = array<i64: 2, 3, 256>}]} {
    %c0 = arith.constant 0 : index
    %c0_0 = arith.constant 0 : index
    %c0_1 = arith.constant 0 : index
    %0 = vector.load %arg4[%c0, %c0_0, %c0_1] : memref<2x3x256xf32, #tpu.memory_space<vmem>>, vector<2x1x256xf32>
    %1 = vector.shape_cast %0 : vector<2x1x256xf32> to vector<2x256xf32>
    %c0_2 = arith.constant 0 : index
    %2 = memref.load %arg2[%c0_2] : memref<3xf32, #tpu.memory_space<smem>>
    %3 = vector.broadcast %2 : f32 to vector<2x256xf32>
    %4 = arith.mulf %3, %1 : vector<2x256xf32>
    %c0_3 = arith.constant 0 : index
    %5 = memref.load %arg3[%c0_3] : memref<3xf32, #tpu.memory_space<smem>>
    %6 = vector.broadcast %5 : f32 to vector<2x256xf32>
    %7 = arith.addf %4, %6 : vector<2x256xf32>
    %c0_4 = arith.constant 0 : index
    %c0_5 = arith.constant 0 : index
    %c0_6 = arith.constant 0 : index
    %8 = vector.load %arg5[%c0_4, %c0_5, %c0_6] : memref<2x3x256xf32, #tpu.memory_space<vmem>>, vector<2x1x256xf32>
    %9 = vector.shape_cast %8 : vector<2x1x256xf32> to vector<2x256xf32>
    %10 = vector.shape_cast %7 : vector<2x256xf32> to vector<2x1x256xf32>
    tpu.vector_store %arg5[%c0_4, %c0_5, %c0_6], %10 {strides = array<i32>} : memref<2x3x256xf32, #tpu.memory_space<vmem>>, vector<2x1x256xf32>,
    %c0_7 = arith.constant 0 : index
    %c1 = arith.constant 1 : index
    %c0_8 = arith.constant 0 : index
    %11 = vector.load %arg4[%c0_7, %c1, %c0_8] : memref<2x3x256xf32, #tpu.memory_space<vmem>>, vector<2x1x256xf32>
    %12 = vector.shape_cast %11 : vector<2x1x256xf32> to vector<2x256xf32>
    %c1_9 = arith.constant 1 : index
    %13 = memref.load %arg2[%c1_9] : memref<3xf32, #tpu.memory_space<smem>>
    %14 = vector.broadcast %13 : f32 to vector<2x256xf32>
    %15 = arith.mulf %14, %12 : vector<2x256xf32>
    %c1_10 = arith.constant 1 : index
    %16 = memref.load %arg3[%c1_10] : memref<3xf32, #tpu.memory_space<smem>>
    %17 = vector.broadcast %16 : f32 to vector<2x256xf32>
    %18 = arith.addf %15, %17 : vector<2x256xf32>
    %c0_11 = arith.constant 0 : index
    %c1_12 = arith.constant 1 : index
    %c0_13 = arith.constant 0 : index
    %19 = vector.load %arg5[%c0_11, %c1_12, %c0_13] : memref<2x3x256xf32, #tpu.memory_space<vmem>>, vector<2x1x256xf32>
    %20 = vector.shape_cast %19 : vector<2x1x256xf32> to vector<2x256xf32>
    %21 = vector.shape_cast %18 : vector<2x256xf32> to vector<2x1x256xf32>
    tpu.vector_store %arg5[%c0_11, %c1_12, %c0_13], %21 {strides = array<i32>} : memref<2x3x256xf32, #tpu.memory_space<vmem>>, vector<2x1x256xf32>,
    %c0_14 = arith.constant 0 : index
    %c2 = arith.constant 2 : index
    %c0_15 = arith.constant 0 : index
    %22 = vector.load %arg4[%c0_14, %c2, %c0_15] : memref<2x3x256xf32, #tpu.memory_space<vmem>>, vector<2x1x256xf32>
    %23 = vector.shape_cast %22 : vector<2x1x256xf32> to vector<2x256xf32>
    %c2_16 = arith.constant 2 : index
    %24 = memref.load %arg2[%c2_16] : memref<3xf32, #tpu.memory_space<smem>>
    %25 = vector.broadcast %24 : f32 to vector<2x256xf32>
    %26 = arith.mulf %25, %23 : vector<2x256xf32>
    %c2_17 = arith.constant 2 : index
    %27 = memref.load %arg3[%c2_17] : memref<3xf32, #tpu.memory_space<smem>>
    %28 = vector.broadcast %27 : f32 to vector<2x256xf32>
    %29 = arith.addf %26, %28 : vector<2x256xf32>
    %c0_18 = arith.constant 0 : index
    %c2_19 = arith.constant 2 : index
    %c0_20 = arith.constant 0 : index
    %30 = vector.load %arg5[%c0_18, %c2_19, %c0_20] : memref<2x3x256xf32, #tpu.memory_space<vmem>>, vector<2x1x256xf32>
    %31 = vector.shape_cast %30 : vector<2x1x256xf32> to vector<2x256xf32>
    %32 = vector.shape_cast %29 : vector<2x256xf32> to vector<2x1x256xf32>
    tpu.vector_store %arg5[%c0_18, %c2_19, %c0_20], %32 {strides = array<i32>} : memref<2x3x256xf32, #tpu.memory_space<vmem>>, vector<2x1x256xf32>,
    return
  }
  func.func @transform_0(%arg0: i32, %arg1: i32) -> i32 {
    %c0_i32 = arith.constant 0 : i32
    %c0_i32_0 = arith.constant 0 : i32
    return %c0_i32 : i32
  }
  func.func @transform_1(%arg0: i32, %arg1: i32) -> i32 {
    %c0_i32 = arith.constant 0 : i32
    %c0_i32_0 = arith.constant 0 : i32
    return %c0_i32 : i32
  }
  func.func @transform_2(%arg0: i32, %arg1: i32) -> (i32, i32, i32) {
    %c0_i32 = arith.constant 0 : i32
    %c0_i32_0 = arith.constant 0 : i32
    return %arg0, %c0_i32, %arg1 : i32, i32, i32
  }
  func.func @transform_3(%arg0: i32, %arg1: i32) -> (i32, i32, i32) {
    %c0_i32 = arith.constant 0 : i32
    %c0_i32_0 = arith.constant 0 : i32
    return %arg0, %c0_i32, %arg1 : i32, i32, i32
  }
}

</mosaic_0001>

<llo_original>
// kernel: tpu_custom_call.1
$region0: #{tpu_custom_call.1}
  #allocation0 [shape = 'u32[]', space=smem, size = 0x4, offset = 0x4, fixed_abs, tag = 'smem constant byte address 0x4 - core index']
  #allocation1 [shape = 'u32[72,128]{1,0:T(1,128)}', space=vmem, size = 0x9000, scoped, tag = 'internal scratch']
  %s0 = inlined_call_operand.vmem [shape: f32[3], index: 0, kind: input, shape index: {}]
  %s1 = inlined_call_operand.vmem [shape: f32[3], index: 1, kind: input, shape index: {}]
  %s2 = inlined_call_operand.vmem [shape: f32[2,3,256], index: 2, kind: input, shape index: {}]
  %s3 = inlined_call_operand.vmem [shape: f32[2,3,256], index: 3, kind: output, shape index: {}]
  %s4 = sld [smem:[#allocation0]]
  $region30: #{tpu_custom_call.1} parent=0
    _
  %s6 = ssub.s32 1, %s4
  %s7 = scalar_select 0, %s6, %s4
  $region1: #{tpu_custom_call.1} parent=0
    #allocation2 [shape = 'u8[512]{0}', space=smem, size = 0x200, scoped, tag = 'input window, operand 0, single buffered']
    #allocation3 [shape = 's32[1]{0}', space=sflag, size = 0x4, scoped, tag = 'scoped memory for tpu_custom_call.1']
    #allocation4 [shape = 'u8[512]{0}', space=smem, size = 0x200, scoped, tag = 'input window, operand 1, single buffered']
    #allocation5 [shape = 's32[1]{0}', space=sflag, size = 0x4, scoped, tag = 'scoped memory for tpu_custom_call.1']
    %8 = vsyncpa [#allocation3], 0
    %9 = vsyncpa [#allocation5], 0
    // Predicated region
    $region2: #{tpu_custom_call.1} parent=1 // pred_check
      _
    $region3: #{tpu_custom_call.1} parent=1 // pred_check_branch
      %11 = sbr.rel (0) target = $region5
    $region4: #{tpu_custom_call.1} parent=1 // pred_region
      %13 = vsyncadd [#allocation3], 0
      %s15 = sshll.u32 %s0, 4
      %s16 = int_to_ptr.vmem [resolvable:$true] %s15
      %18 = dma.vmem_to_smem %s16, 16, [#allocation2], [#allocation3]
    $region5: #{tpu_custom_call.1} parent=1 // pred_fallthru
      _
    // Predicated region
    $region6: #{tpu_custom_call.1} parent=1 // pred_check
      _
    $region7: #{tpu_custom_call.1} parent=1 // pred_check_branch
      %20 = sbr.rel (0) target = $region9
    $region8: #{tpu_custom_call.1} parent=1 // pred_region
      %22 = vsyncadd [#allocation5], 0
      %s24 = sshll.u32 %s1, 4
      %s25 = int_to_ptr.vmem [resolvable:$true] %s24
      %27 = dma.vmem_to_smem %s25, 16, [#allocation4], [#allocation5]
    $region9: #{tpu_custom_call.1} parent=1 // pred_fallthru
      _
    // Predicated region
    $region10: #{tpu_custom_call.1} parent=1 // pred_check
      _
    $region11: #{tpu_custom_call.1} parent=1 // pred_check_branch
      %29 = sbr.rel (0) target = $region13
    $region12: #{tpu_custom_call.1} parent=1 // pred_region
      _
    $region13: #{tpu_custom_call.1} parent=1 // pred_fallthru
      _
    // Predicated region
    $region14: #{tpu_custom_call.1} parent=1 // pred_check
      _
    $region15: #{tpu_custom_call.1} parent=1 // pred_check_branch
      %31 = sbr.rel (0) target = $region17
    $region16: #{tpu_custom_call.1} parent=1 // pred_region
      %33 = dma.done [#allocation3], 16
    $region17: #{tpu_custom_call.1} parent=1 // pred_fallthru
      _
    // Predicated region
    $region18: #{tpu_custom_call.1} parent=1 // pred_check
      _
    $region19: #{tpu_custom_call.1} parent=1 // pred_check_branch
      %35 = sbr.rel (0) target = $region21
    $region20: #{tpu_custom_call.1} parent=1 // pred_region
      %37 = dma.done [#allocation5], 16
    $region21: #{tpu_custom_call.1} parent=1 // pred_fallthru
      _
    %38 = sfence
    %v39 = vld [vmem:[%s2] ss:$4 sm:$0x3]
    %s40 = scalar_lea.vmem %s2, 8
    %v41 = vld [vmem:[%s40] ss:$4 sm:$0x3]
    %s42 = sld [smem:[#allocation2]]
    %v43 = vstv %s42
    %v44 = vmul.f32 %v43, %v39
    %v45 = vmul.f32 %v43, %v41
    %s46 = sld [smem:[#allocation4]]
    %v47 = vstv %s46
    %v48 = vadd.f32 %v44, %v47
    %v49 = vadd.f32 %v45, %v47
    %v50 = vlaneseq
    %vm51 = vcmp.ge.s32.totalorder %v50, 0
    %vm52 = vcmp.lt.s32.totalorder %v50, 256
    %vm53 = vmand %vm51, %vm52
    %54 = vst.msk [vmem:[%s3] ss:$4 sm:$0x3] %vm53, %v48
    %s55 = scalar_lea.vmem %s3, 8
    %56 = vst.msk [vmem:[%s55] ss:$4 sm:$0x3] %vm53, %v49
    %s57 = scalar_lea.vmem %s2, 1
    %v58 = vld [vmem:[%s57] ss:$4 sm:$0x3]
    %s59 = scalar_lea.vmem %s2, 9
    %v60 = vld [vmem:[%s59] ss:$4 sm:$0x3]
    %s61 = sld [smem:[#allocation2 + $0x1]]
    %v62 = vstv %s61
    %v63 = vmul.f32 %v62, %v58
    %v64 = vmul.f32 %v62, %v60
    %s65 = sld [smem:[#allocation4 + $0x1]]
    %v66 = vstv %s65
    %v67 = vadd.f32 %v63, %v66
    %v68 = vadd.f32 %v64, %v66
    %s69 = scalar_lea.vmem %s3, 1
    %70 = vst.msk [vmem:[%s69] ss:$4 sm:$0x3] %vm53, %v67
    %s71 = scalar_lea.vmem %s3, 9
    %72 = vst.msk [vmem:[%s71] ss:$4 sm:$0x3] %vm53, %v68
    %s73 = scalar_lea.vmem %s2, 2
    %v74 = vld [vmem:[%s73] ss:$4 sm:$0x3]
    %s75 = scalar_lea.vmem %s2, 10
    %v76 = vld [vmem:[%s75] ss:$4 sm:$0x3]
    %s77 = sld [smem:[#allocation2 + $0x2]]
    %v78 = vstv %s77
    %v79 = vmul.f32 %v78, %v74
    %v80 = vmul.f32 %v78, %v76
    %s81 = sld [smem:[#allocation4 + $0x2]]
    %v82 = vstv %s81
    %v83 = vadd.f32 %v79, %v82
    %v84 = vadd.f32 %v80, %v82
    %s85 = scalar_lea.vmem %s3, 2
    %86 = vst.msk [vmem:[%s85] ss:$4 sm:$0x3] %vm53, %v83
    %s87 = scalar_lea.vmem %s3, 10
    %88 = vst.msk [vmem:[%s87] ss:$4 sm:$0x3] %vm53, %v84
    // Predicated region
    $region22: #{tpu_custom_call.1} parent=1 // pred_check
      _
    $region23: #{tpu_custom_call.1} parent=1 // pred_check_branch
      %90 = sbr.rel (0) target = $region25
    $region24: #{tpu_custom_call.1} parent=1 // pred_region
      _
    $region25: #{tpu_custom_call.1} parent=1 // pred_fallthru
      _
    // Predicated region
    $region26: #{tpu_custom_call.1} parent=1 // pred_check
      _
    $region27: #{tpu_custom_call.1} parent=1 // pred_check_branch
      %92 = sbr.rel (0) target = $region29
    $region28: #{tpu_custom_call.1} parent=1 // pred_region
      _
    $region29: #{tpu_custom_call.1} parent=1 // pred_fallthru
      _
    %93 = vsyncpa [#allocation3], 1
    %94 = vsyncpa [#allocation5], 1

</llo_original>
